<compile_context>
chip_gen: v7x
topology: tpu7x:2x2x1
jax: 0.10.0
libtpu: 0.0.40
codegen_flags: <defaults>
</compile_context>

<pallas_src>
import functools

import jax
import jax.numpy as jnp
from jax.experimental import pallas as pl
from jax.experimental.pallas import tpu as pltpu


def _round_up(x, mult):
    return ((x + mult - 1) // mult) * mult


def _cosface_kernel(labels_ref, logits_ref, out_ref, *, s, m, tile_c):
    # labels_ref: (tile_n, 1) int32     logits_ref/out_ref: (tile_n, tile_c)
    j = pl.program_id(1)
    lbl = labels_ref[...]                                   # (tn, 1)
    # Compare *local* column indices against the label shifted into this
    # tile's coordinate frame (cheaper than offsetting a full-tile iota).
    lbl_local = lbl - j * tile_c                            # (tn, 1)
    cols = jax.lax.broadcasted_iota(jnp.int32, out_ref.shape, 1)
    is_target = (cols == lbl_local) & (lbl != -1)           # (tn, tc)

    # Do the margin subtraction and scale in f32, cast once at the store.
    x = logits_ref[...].astype(jnp.float32)
    y = jnp.where(is_target, x - m, x) * s
    out_ref[...] = y.astype(out_ref.dtype)


def cosface(logits, labels, *, s=64.0, m=0.4, tile_n=None, tile_c=None,
            donate_logits=False):
    """Applies the CosFace margin + scale. Returns new (scaled) logits."""
    N, C = logits.shape

    # Dtype-aware sublane multiple: f32 -> 8, bf16/f16 -> 16, int8/fp8 -> 32.
    itemsize = jnp.dtype(logits.dtype).itemsize
    sub = max(8, 32 // max(1, itemsize))

    # Large, lane-dense tiles (clamped to the rounded-up array dims).
    if tile_c is None:
        tile_c = min(1024, _round_up(C, 128))
    if tile_n is None:
        tile_n = min(512, _round_up(N, sub))

    grid = (pl.cdiv(N, tile_n), pl.cdiv(C, tile_c))
    labels2d = labels.astype(jnp.int32).reshape(N, 1)
    kernel = functools.partial(_cosface_kernel, s=float(s), m=float(m),
                               tile_c=tile_c)

    return pl.pallas_call(
        kernel,
        out_shape=jax.ShapeDtypeStruct((N, C), logits.dtype),
        grid_spec=pltpu.PrefetchScalarGridSpec(
            num_scalar_prefetch=0,
            grid=grid,
            in_specs=[
                pl.BlockSpec((tile_n, 1), lambda i, j: (i, 0)),       # labels
                pl.BlockSpec((tile_n, tile_c), lambda i, j: (i, j)),  # logits
            ],
            out_specs=pl.BlockSpec((tile_n, tile_c), lambda i, j: (i, j)),
        ),
        compiler_params=pltpu.CompilerParams(
            dimension_semantics=("parallel", "parallel"),
            vmem_limit_bytes=32 << 20),
        # Optionally overwrite the logits HBM buffer (logits is input idx 1).
        input_output_aliases=({1: 0} if donate_logits else {}),
    )(labels2d, logits)


def _cosface_ref(logits, labels, s=64.0, m=0.4):
    """Pure-JAX reference mirroring the PyTorch semantics."""
    N, C = logits.shape
    one_hot = (jnp.arange(C)[None, :] == labels[:, None]) & (labels[:, None] != -1)
    return ((logits.astype(jnp.float32) - jnp.where(one_hot, m, 0.0)) * s
            ).astype(logits.dtype)


if __name__ == "__main__":
    key = jax.random.PRNGKey(0)
    k1, k2 = jax.random.split(key)

    N, C = 8, 256          # small batch of "cosine logits" over 256 classes
    logits = jax.random.normal(k1, (N, C), dtype=jnp.float32)
    labels = jax.random.randint(k2, (N,), 0, C, dtype=jnp.int32)
    # Mark a couple of rows as "ignore" (-1), as the module supports.
    labels = labels.at[1].set(-1).at[5].set(-1)

    out = cosface(logits, labels, s=64.0, m=0.4)
    out = jax.block_until_ready(out)

    ref = _cosface_ref(logits, labels, s=64.0, m=0.4)
    assert jnp.allclose(out, ref, atol=1e-5, rtol=1e-5), "mismatch vs reference"

    # Also exercise a non-tile-aligned (ragged) shape to check masked edges.
    N2, C2 = 13, 300
    logits2 = jax.random.normal(k1, (N2, C2), dtype=jnp.float32)
    labels2 = jax.random.randint(k2, (N2,), 0, C2, dtype=jnp.int32)
    labels2 = labels2.at[3].set(-1)
    out2 = jax.block_until_ready(cosface(logits2, labels2))
    ref2 = _cosface_ref(logits2, labels2)
    assert jnp.allclose(out2, ref2, atol=1e-5, rtol=1e-5), "ragged mismatch"

    print("KERNEL_OK")
</pallas_src>

<mosaic_0001>
module attributes {stable_mosaic.version = 11 : i64} {
  func.func @_cosface_kernel(%arg0: i32, %arg1: i32, %arg2: memref<8x1xi32, #tpu.memory_space<vmem>>, %arg3: memref<8x256xf32, #tpu.memory_space<vmem>>, %arg4: memref<8x256xf32, #tpu.memory_space<vmem>>) attributes {dimension_semantics = [#tpu.dimension_semantics<parallel>, #tpu.dimension_semantics<parallel>], iteration_bounds = array<i64: 1, 1>, scalar_prefetch = 0 : i64, scratch_operands = 0 : i64, tpu.core_type = #tpu.core_type<tc>, window_params = [{transform_indices = @transform_0, window_bounds = array<i64: 8, 1>}, {transform_indices = @transform_1, window_bounds = array<i64: 8, 256>}, {transform_indices = @transform_2, window_bounds = array<i64: 8, 256>}]} {
    %c0 = arith.constant 0 : index
    %c0_0 = arith.constant 0 : index
    %0 = vector.load %arg2[%c0, %c0_0] : memref<8x1xi32, #tpu.memory_space<vmem>>, vector<8x1xi32>
    %c256_i32 = arith.constant 256 : i32
    %1 = arith.muli %arg1, %c256_i32 : i32
    %2 = vector.broadcast %1 : i32 to vector<8x1xi32>
    %3 = arith.subi %0, %2 : vector<8x1xi32>
    %4 = tpu.iota {dimensions = array<i32: 1>} : vector<8x256xi32>
    %5 = vector.broadcast %3 : vector<8x1xi32> to vector<8x256xi32>
    %6 = arith.cmpi eq, %4, %5 : vector<8x256xi32>
    %c-1_i32 = arith.constant -1 : i32
    %7 = vector.broadcast %c-1_i32 : i32 to vector<8x1xi32>
    %8 = arith.cmpi ne, %0, %7 : vector<8x1xi32>
    %9 = vector.broadcast %8 : vector<8x1xi1> to vector<8x256xi1>
    %10 = arith.andi %6, %9 : vector<8x256xi1>
    %c0_1 = arith.constant 0 : index
    %c0_2 = arith.constant 0 : index
    %11 = vector.load %arg3[%c0_1, %c0_2] : memref<8x256xf32, #tpu.memory_space<vmem>>, vector<8x256xf32>
    %cst = arith.constant 4.000000e-01 : f32
    %12 = vector.broadcast %cst : f32 to vector<8x256xf32>
    %13 = arith.subf %11, %12 : vector<8x256xf32>
    %14 = arith.select %10, %13, %11 : vector<8x256xi1>, vector<8x256xf32>
    %cst_3 = arith.constant 6.400000e+01 : f32
    %15 = vector.broadcast %cst_3 : f32 to vector<8x256xf32>
    %16 = arith.mulf %14, %15 : vector<8x256xf32>
    %c0_4 = arith.constant 0 : index
    %c0_5 = arith.constant 0 : index
    %17 = vector.load %arg4[%c0_4, %c0_5] : memref<8x256xf32, #tpu.memory_space<vmem>>, vector<8x256xf32>
    tpu.vector_store %arg4[%c0_4, %c0_5], %16 {strides = array<i32>} : memref<8x256xf32, #tpu.memory_space<vmem>>, vector<8x256xf32>,
    return
  }
  func.func @transform_0(%arg0: i32, %arg1: i32) -> (i32, i32) {
    %c0_i32 = arith.constant 0 : i32
    %c0_i32_0 = arith.constant 0 : i32
    return %arg0, %c0_i32 : i32, i32
  }
  func.func @transform_1(%arg0: i32, %arg1: i32) -> (i32, i32) {
    %c0_i32 = arith.constant 0 : i32
    return %arg0, %arg1 : i32, i32
  }
  func.func @transform_2(%arg0: i32, %arg1: i32) -> (i32, i32) {
    %c0_i32 = arith.constant 0 : i32
    return %arg0, %arg1 : i32, i32
  }
}

</mosaic_0001>

<llo_original>
// kernel: tpu_custom_call.1
$region0: #{tpu_custom_call.1}
  #allocation0 [shape = 'u32[]', space=smem, size = 0x4, offset = 0x4, fixed_abs, tag = 'smem constant byte address 0x4 - core index']
  #allocation1 [shape = 'u32[144,128]{1,0:T(1,128)}', space=vmem, size = 0x12000, scoped, tag = 'internal scratch']
  %s0 = inlined_call_operand.vmem [shape: s32[8,1], index: 0, kind: input, shape index: {}]
  %s1 = inlined_call_operand.hbm [shape: f32[8,256], index: 1, kind: input, shape index: {}]
  %s2 = inlined_call_operand.hbm [shape: f32[8,256], index: 2, kind: output, shape index: {}]
  %s3 = sld [smem:[#allocation0]]
  $region22: #{tpu_custom_call.1} parent=0
    _
  %s5 = ssub.s32 1, %s3
  %s6 = scalar_select 0, %s5, %s3
  $region1: #{tpu_custom_call.1} parent=0
    #allocation2 [shape = 'u8[8192]{0}', space=vmem, size = 0x2000, scoped, tag = 'input window, operand 1, single buffered']
    #allocation3 [shape = 's32[1]{0}', space=sflag, size = 0x4, scoped, tag = 'scoped memory for tpu_custom_call.1']
    #allocation4 [shape = 's32[1]{0}', space=sflag, size = 0x4, scoped, tag = 'scoped memory for tpu_custom_call.1']
    #allocation5 [shape = 'u8[8192]{0}', space=vmem, size = 0x2000, scoped, tag = 'output window, operand 0, single buffered']
    %7 = vsyncpa [#allocation3], 0
    %8 = vsyncpa [#allocation4], 0
    // Predicated region
    $region2: #{tpu_custom_call.1} parent=1 // pred_check
      _
    $region3: #{tpu_custom_call.1} parent=1 // pred_check_branch
      %10 = sbr.rel (0) target = $region5
    $region4: #{tpu_custom_call.1} parent=1 // pred_region
      _
    $region5: #{tpu_custom_call.1} parent=1 // pred_fallthru
      _
    // Predicated region
    $region6: #{tpu_custom_call.1} parent=1 // pred_check
      _
    $region7: #{tpu_custom_call.1} parent=1 // pred_check_branch
      %12 = sbr.rel (0) target = $region9
    $region8: #{tpu_custom_call.1} parent=1 // pred_region
      %s14 = ssub.s32 256, 256
      %15 = vsyncadd [#allocation3], %s14
      %s17 = sshll.u32 [#allocation2], 4
      %s18 = int_to_ptr.vmem [resolvable:$true] %s17
      %20 = dma.hbm_to_vmem [thread:$0]  %s1, 256, %s18, [#allocation3]
    $region9: #{tpu_custom_call.1} parent=1 // pred_fallthru
      _
    // Predicated region
    $region10: #{tpu_custom_call.1} parent=1 // pred_check
      _
    $region11: #{tpu_custom_call.1} parent=1 // pred_check_branch
      %22 = sbr.rel (0) target = $region13
    $region12: #{tpu_custom_call.1} parent=1 // pred_region
      %23 = dma.done [#allocation3], 256
    $region13: #{tpu_custom_call.1} parent=1 // pred_fallthru
      _
    %v24 = vld [vmem:[%s0] sm:$0xff]
    %s25 = smul.u32 0, 256
    %v26 = vstv %s25
    %v27 = vsub.s32 %v24, %v26
    %v28 = vlaneseq
    %v29 = vand.u32 %v28, 127
    %v30 = vadd.s32 %v29, 128
    %31 = vset.pattern.permute.xlu0 0
    %32 = vperm.xlu0 %31, %v27
    %v33 = vpop.permute.xlu0 %32
    %vm34 = vcmp.eq.s32.totalorder %v29, %v33
    %vm35 = vcmp.eq.s32.totalorder %v30, %v33
    %vm36 = vcmp.ne.s32.totalorder %v24, 4294967295
    %v37 = vsel %vm36, 1, 0
    %38 = vset.pattern.permute.xlu0 0
    %39 = vperm.xlu0 %38, %v37
    %v40 = vpop.permute.xlu0 %39
    %vm41 = vcmp.eq.s32.totalorder %v40, 1
    %vm42 = vmand %vm34, %vm41
    %vm43 = vmand %vm35, %vm41
    %v44 = vld [vmem:[#allocation2] sm:$0xff]
    %v45 = vld [vmem:[#allocation2 + $0x8] sm:$0xff]
    %v46 = vsub.f32 %v44, 0.4
    %v47 = vsub.f32 %v45, 0.4
    %v48 = vsel %vm42, %v46, %v44
    %v49 = vsel %vm43, %v47, %v45
    %v50 = vmul.f32 %v48, 64.0
    %v51 = vmul.f32 %v49, 64.0
    %52 = vst [vmem:[#allocation5] sm:$0xff] %v50
    %53 = vst [vmem:[#allocation5 + $0x8] sm:$0xff] %v51
    // Predicated region
    $region14: #{tpu_custom_call.1} parent=1 // pred_check
      _
    $region15: #{tpu_custom_call.1} parent=1 // pred_check_branch
      %55 = sbr.rel (0) target = $region17
    $region16: #{tpu_custom_call.1} parent=1 // pred_region
      %s57 = ssub.s32 256, 256
      %58 = vsyncadd [#allocation4], %s57
      %s60 = sshll.u32 [#allocation5], 4
      %s61 = int_to_ptr.vmem [resolvable:$true] %s60
      %63 = dma.vmem_to_hbm [thread:$0]  %s61, 256, %s2, [#allocation4]
    $region17: #{tpu_custom_call.1} parent=1 // pred_fallthru
      _
    // Predicated region
    $region18: #{tpu_custom_call.1} parent=1 // pred_check
      _
    $region19: #{tpu_custom_call.1} parent=1 // pred_check_branch
      %65 = sbr.rel (0) target = $region21
    $region20: #{tpu_custom_call.1} parent=1 // pred_region
      %66 = dma.done [#allocation4], 256
    $region21: #{tpu_custom_call.1} parent=1 // pred_fallthru
      _
    %67 = vsyncpa [#allocation3], 1
    %68 = vsyncpa [#allocation4], 1

</llo_original>
